<compile_context>
chip_gen: v7x
topology: tpu7x:2x2x1
jax: 0.10.0
libtpu: 0.0.40
codegen_flags: <defaults>
</compile_context>

<pallas_src>
import functools

import jax
import jax.numpy as jnp
import numpy as np
from jax.experimental import pallas as pl
from jax.experimental.pallas import tpu as pltpu

EMBEDDING_DIM = 32
OUTPUT_DIM = 64

# M-tiling only kicks in for large effective batch (v7x megacore sharding);
# below this the no-grid single-block path is strictly cheaper.
_M_TILE = 1024
_M_TILE_THRESHOLD = 2 * _M_TILE


def _round_up(n, m):
    return ((n + m - 1) // m) * m


# ------------------------------ Pallas kernel --------------------------------
def _linear_kernel(x_ref, w_ref, b_ref, o_ref):
    # One MXU pass per block: (m, D) @ (D, Vp) + (1, Vp), f32 accumulate.
    o_ref[...] = (jnp.dot(x_ref[...], w_ref[...],
                          preferred_element_type=jnp.float32)
                  + b_ref[...])


# --------------------------- parameter preparation ---------------------------
def prepare_classification_head_params(weight, bias):
    """Precompute lane-padded parameters ONCE (not on the forward path).

    weight: (V, D) PyTorch nn.Linear layout; bias: (V,).
    Returns (w_pad, b_pad) with shapes (D, Vp) and (1, Vp), Vp = round_up(V,128).
    """
    V, D = weight.shape
    Vp = _round_up(V, 128)
    w_pad = jnp.pad(jnp.asarray(weight, jnp.float32).T, ((0, 0), (0, Vp - V)))
    b_pad = jnp.pad(jnp.asarray(bias, jnp.float32)[None, :],
                    ((0, 0), (0, Vp - V)))
    return w_pad, b_pad


# ------------------------------ forward wrapper -------------------------------
@functools.partial(jax.jit, static_argnames=("output_dim",))
def classification_head(x, w_pad, b_pad, output_dim):
    """y = x @ W.T + b, with W/b already padded by prepare_classification_head_params."""
    *lead, D = x.shape
    Vp = w_pad.shape[1]
    V = output_dim
    M = int(np.prod(lead)) if lead else 1

    x2d = x.reshape(M, D).astype(jnp.float32)

    vmem = pltpu.MemorySpace.VMEM
    cost = pl.CostEstimate(
        flops=2 * M * D * Vp,
        transcendentals=0,
        bytes_accessed=4 * (M * D + D * Vp + Vp + M * Vp),
    )

    if M < _M_TILE_THRESHOLD:
        # Small-batch path: one MXU pass, no grid, whole arrays in VMEM.
        out = pl.pallas_call(
            _linear_kernel,
            out_shape=jax.ShapeDtypeStruct((M, Vp), jnp.float32),
            in_specs=[pl.BlockSpec(memory_space=vmem),
                      pl.BlockSpec(memory_space=vmem),
                      pl.BlockSpec(memory_space=vmem)],
            out_specs=pl.BlockSpec(memory_space=vmem),
            cost_estimate=cost,
        )(x2d, w_pad, b_pad)
    else:
        # Large-batch path: tile the M axis, weight/bias stay resident.
        # "parallel" lets v7x shard row-tiles across its two TensorCores
        # (harmless no-op on single-TC v5e/v6e).
        tm = _M_TILE
        Mp = _round_up(M, tm)
        x2d_p = jnp.pad(x2d, ((0, Mp - M), (0, 0)))
        out = pl.pallas_call(
            _linear_kernel,
            out_shape=jax.ShapeDtypeStruct((Mp, Vp), jnp.float32),
            grid=(Mp // tm,),
            in_specs=[pl.BlockSpec((tm, D), lambda i: (i, 0)),
                      pl.BlockSpec((D, Vp), lambda i: (0, 0)),
                      pl.BlockSpec((1, Vp), lambda i: (0, 0))],
            out_specs=pl.BlockSpec((tm, Vp), lambda i: (i, 0)),
            compiler_params=pltpu.CompilerParams(
                dimension_semantics=("parallel",)),
            cost_estimate=cost,
        )(x2d_p, w_pad, b_pad)
        out = out[:M]

    return out[:, :V].reshape(*lead, V)


# ------------------------------ main ------------------------------------------
if __name__ == "__main__":
    B, S = 2, 8
    key = jax.random.PRNGKey(0)
    kx, kw, kb = jax.random.split(key, 3)

    x = jax.random.normal(kx, (B, S, EMBEDDING_DIM), jnp.float32)
    # PyTorch nn.Linear layout: weight (out_features, in_features), bias (out,)
    weight = 0.1 * jax.random.normal(kw, (OUTPUT_DIM, EMBEDDING_DIM), jnp.float32)
    bias = 0.1 * jax.random.normal(kb, (OUTPUT_DIM,), jnp.float32)

    # One-time parameter preparation (not part of the per-call path).
    w_pad, b_pad = prepare_classification_head_params(weight, bias)
    w_pad = jax.block_until_ready(w_pad)
    b_pad = jax.block_until_ready(b_pad)

    y = classification_head(x, w_pad, b_pad, OUTPUT_DIM)
    y = jax.block_until_ready(y)

    ref = x @ weight.T + bias
    np.testing.assert_allclose(np.asarray(y), np.asarray(ref),
                               atol=1e-5, rtol=1e-5)
    print("KERNEL_OK")
</pallas_src>

<mosaic_0001>
module attributes {stable_mosaic.version = 11 : i64} {
  func.func @_linear_kernel(%arg0: memref<16x32xf32, #tpu.memory_space<vmem>>, %arg1: memref<32x128xf32, #tpu.memory_space<vmem>>, %arg2: memref<1x128xf32, #tpu.memory_space<vmem>>, %arg3: memref<16x128xf32, #tpu.memory_space<vmem>>) attributes {dimension_semantics = [], scalar_prefetch = 0 : i64, scratch_operands = 0 : i64, tpu.core_type = #tpu.core_type<tc>} {
    %c0 = arith.constant 0 : index
    %c0_0 = arith.constant 0 : index
    %0 = vector.load %arg0[%c0, %c0_0] : memref<16x32xf32, #tpu.memory_space<vmem>>, vector<16x32xf32>
    %c0_1 = arith.constant 0 : index
    %c0_2 = arith.constant 0 : index
    %1 = vector.load %arg1[%c0_1, %c0_2] : memref<32x128xf32, #tpu.memory_space<vmem>>, vector<32x128xf32>
    %cst = arith.constant dense<0.000000e+00> : vector<16x128xf32>
    %2 = tpu.matmul %0, %1, %cst {dimension_numbers = #tpu.dot_dimension_numbers<[1], [0], [0], [1], [0, 0, 1, 1], [], []>} : vector<16x32xf32>, vector<32x128xf32>, vector<16x128xf32> -> vector<16x128xf32>
    %c0_3 = arith.constant 0 : index
    %c0_4 = arith.constant 0 : index
    %3 = vector.load %arg2[%c0_3, %c0_4] : memref<1x128xf32, #tpu.memory_space<vmem>>, vector<1x128xf32>
    %4 = vector.broadcast %3 : vector<1x128xf32> to vector<16x128xf32>
    %5 = arith.addf %2, %4 : vector<16x128xf32>
    %c0_5 = arith.constant 0 : index
    %c0_6 = arith.constant 0 : index
    %6 = vector.load %arg3[%c0_5, %c0_6] : memref<16x128xf32, #tpu.memory_space<vmem>>, vector<16x128xf32>
    tpu.vector_store %arg3[%c0_5, %c0_6], %5 {strides = array<i32>} : memref<16x128xf32, #tpu.memory_space<vmem>>, vector<16x128xf32>,
    return
  }
}

</mosaic_0001>

<llo_original>
// kernel: classification_head.1
$region0: #{classification_head.1}
  #allocation0 [shape = 'u32[]', space=smem, size = 0x4, offset = 0x4, fixed_abs, tag = 'smem constant byte address 0x4 - core index']
  #allocation1 [shape = 'u32[144,128]{1,0:T(1,128)}', space=vmem, size = 0x12000, scoped, tag = 'internal scratch']
  %s0 = inlined_call_operand.hbm [shape: f32[16,32], index: 0, kind: input, shape index: {}]
  %s1 = inlined_call_operand.hbm [shape: f32[32,128], index: 1, kind: input, shape index: {}]
  %s2 = inlined_call_operand.vmem [shape: f32[1,128], index: 2, kind: input, shape index: {}]
  %s3 = inlined_call_operand.vmem [shape: f32[16,128], index: 3, kind: output, shape index: {}]
  %s4 = sld [smem:[#allocation0]]
  $region30: #{classification_head.1} parent=0
    _
  %s6 = ssub.s32 1, %s4
  %s7 = scalar_select 0, %s6, %s4
  $region1: #{classification_head.1} parent=0
    #allocation2 [shape = 'u8[8192]{0}', space=vmem, size = 0x2000, scoped, tag = 'input window, operand 0, single buffered']
    #allocation3 [shape = 's32[1]{0}', space=sflag, size = 0x4, scoped, tag = 'scoped memory for classification_head.1']
    #allocation4 [shape = 'u8[16384]{0}', space=vmem, size = 0x4000, scoped, tag = 'input window, operand 1, single buffered']
    #allocation5 [shape = 's32[1]{0}', space=sflag, size = 0x4, scoped, tag = 'scoped memory for classification_head.1']
    %8 = vsyncpa [#allocation3], 0
    %9 = vsyncpa [#allocation5], 0
    // Predicated region
    $region2: #{classification_head.1} parent=1 // pred_check
      _
    $region3: #{classification_head.1} parent=1 // pred_check_branch
      %11 = sbr.rel (0) target = $region5
    $region4: #{classification_head.1} parent=1 // pred_region
      %s13 = ssub.s32 256, 256
      %14 = vsyncadd [#allocation3], %s13
      %s15 = sshll.u32 [#allocation2], 4
      %s16 = int_to_ptr.vmem [resolvable:$true] %s15
      %21 = dma.hbm_to_vmem [thread:$0]  %s0, 256, %s16, [#allocation3], 128, 128, 8
    $region5: #{classification_head.1} parent=1 // pred_fallthru
      _
    // Predicated region
    $region6: #{classification_head.1} parent=1 // pred_check
      _
    $region7: #{classification_head.1} parent=1 // pred_check_branch
      %23 = sbr.rel (0) target = $region9
    $region8: #{classification_head.1} parent=1 // pred_region
      %s25 = ssub.s32 512, 512
      %26 = vsyncadd [#allocation5], %s25
      %s27 = sshll.u32 [#allocation4], 4
      %s28 = int_to_ptr.vmem [resolvable:$true] %s27
      %33 = dma.hbm_to_vmem [thread:$0]  %s1, 512, %s28, [#allocation5], 128, 128, 8
    $region9: #{classification_head.1} parent=1 // pred_fallthru
      _
    // Predicated region
    $region10: #{classification_head.1} parent=1 // pred_check
      _
    $region11: #{classification_head.1} parent=1 // pred_check_branch
      %35 = sbr.rel (0) target = $region13
    $region12: #{classification_head.1} parent=1 // pred_region
      _
    $region13: #{classification_head.1} parent=1 // pred_fallthru
      _
    // Predicated region
    $region14: #{classification_head.1} parent=1 // pred_check
      _
    $region15: #{classification_head.1} parent=1 // pred_check_branch
      %37 = sbr.rel (0) target = $region17
    $region16: #{classification_head.1} parent=1 // pred_region
      %38 = dma.done [#allocation3], 256
    $region17: #{classification_head.1} parent=1 // pred_fallthru
      _
    // Predicated region
    $region18: #{classification_head.1} parent=1 // pred_check
      _
    $region19: #{classification_head.1} parent=1 // pred_check_branch
      %40 = sbr.rel (0) target = $region21
    $region20: #{classification_head.1} parent=1 // pred_region
      %41 = dma.done [#allocation5], 512
    $region21: #{classification_head.1} parent=1 // pred_fallthru
      _
    %v42 = vld [vmem:[#allocation2] sm:$0xff]
    %v43 = vld [vmem:[#allocation2 + $0x8] sm:$0xff]
    %v44 = vld [vmem:[#allocation4] sm:$0xff]
    %v45 = vld [vmem:[#allocation4 + $0x8] sm:$0xff]
    %v46 = vld [vmem:[#allocation4 + $0x10] sm:$0xff]
    %v47 = vld [vmem:[#allocation4 + $0x18] sm:$0xff]
    %v48 = vld [vmem:[%s2] sm:$0x1]
    %v50 = vlaneseq
    %v51 = vshrl.u32 %v50, 7
    %v52 = vsub.s32 0, %v51
    %v53 = vrot.slane %v48, %v52
    %vm55 = vcmask 261120
    %v57 = vsel %vm55, %v42, 0
    %v60 = vsel %vm55, %v43, 0
    %62 = vmatprep.subr.mxu0 0.0
    %63 = vmatpush1.msra.mxu0 %v44
    %64 = vmatprep.subr.mxu0 0.0
    %65 = vmatpush1.msra.mxu0 %v45
    %66 = vmatprep.subr.mxu0 0.0
    %67 = vmatpush1.msra.mxu0 %v46
    %68 = vmatprep.subr.mxu0 0.0
    %69 = vmatpush1.msra.mxu0 %v47
    %70 = vmatprep.subr.mxu0 0.0
    %71 = vmatpush1.msra.mxu0 0.0
    %72 = vmatprep.subr.mxu0 0.0
    %73 = vmatpush1.msra.mxu0 0.0
    %74 = vmatprep.subr.mxu0 0.0
    %75 = vmatpush1.msra.mxu0 0.0
    %76 = vmatprep.subr.mxu0 0.0
    %77 = vmatpush1.msra.mxu0 0.0
    %78 = vmatprep.subr.mxu0 0.0
    %79 = vmatpush1.msra.mxu0 0.0
    %80 = vmatprep.subr.mxu0 0.0
    %81 = vmatpush1.msra.mxu0 0.0
    %82 = vmatprep.subr.mxu0 0.0
    %83 = vmatpush1.msra.mxu0 0.0
    %84 = vmatprep.subr.mxu0 0.0
    %85 = vmatpush1.msra.mxu0 0.0
    %86 = vmatprep.subr.mxu0 0.0
    %87 = vmatpush1.msra.mxu0 0.0
    %88 = vmatprep.subr.mxu0 0.0
    %89 = vmatpush1.msra.mxu0 0.0
    %90 = vmatprep.subr.mxu0 0.0
    %91 = vmatpush1.msra.mxu0 0.0
    %92 = vmatprep.subr.mxu0 0.0
    %93 = vmatpush1.msra.mxu0 0.0
    %94 = vmatprep.subr.mxu0 0.0
    %95 = vmatpush1.msra.mxu0 0.0
    %96 = vmatprep.subr.mxu0 0.0
    %97 = vmatpush1.msra.mxu0 0.0
    %98 = vmatprep.subr.mxu0 0.0
    %99 = vmatpush1.msra.mxu0 0.0
    %100 = vmatprep.subr.mxu0 0.0
    %101 = vmatpush1.msra.mxu0 0.0
    %102 = vmatprep.subr.mxu0 0.0
    %103 = vmatpush1.msra.mxu0 0.0
    %104 = vmatprep.subr.mxu0 0.0
    %105 = vmatpush1.msra.mxu0 0.0
    %106 = vmatprep.subr.mxu0 0.0
    %107 = vmatpush1.msra.mxu0 0.0
    %108 = vmatprep.subr.mxu0 0.0
    %109 = vmatpush1.msra.mxu0 0.0
    %110 = vmatprep.subr.mxu0 0.0
    %111 = vmatpush1.msra.mxu0 0.0
    %112 = vmatprep.subr.mxu0 0.0
    %113 = vmatpush1.msra.mxu0 0.0
    %114 = vmatprep.subr.mxu0 0.0
    %115 = vmatpush1.msra.mxu0 0.0
    %116 = vmatprep.subr.mxu0 0.0
    %117 = vmatpush1.msra.mxu0 0.0
    %118 = vmatprep.subr.mxu0 0.0
    %119 = vmatpush1.msra.mxu0 0.0
    %120 = vmatprep.subr.mxu0 0.0
    %121 = vmatpush1.msra.mxu0 0.0
    %122 = vmatprep.subr.mxu0 0.0
    %123 = vmatpush1.msra.mxu0 0.0
    %124 = vmatprep.subr.mxu0 0.0
    %125 = vmatpush1.msra.mxu0 0.0
    %126 = vmatprep.mubr.f32.mxu0 0.0
    %127 = vmatmul.mubr.f32.gmra.mrb[0].mxu0 %v57
    %v128 = vpop.f32.mrb[0].mxu0
    %v129 = vadd.f32 %v53, %v128
    %v130 = vpop.f32.mrb[0].mxu0
    %131 = vmatprep.mubr.f32.mxu0 0.0
    %132 = vmatmul.mubr.f32.gmra.mrb[0].mxu0 %v60
    %v133 = vpop.f32.mrb[0].mxu0
    %v134 = vadd.f32 %v53, %v133
    %v135 = vpop.f32.mrb[0].mxu0
    %136 = vdwg.mxu0
    %137 = vst [vmem:[%s3] sm:$0xff] %v129
    %138 = vst [vmem:[%s3 + $0x8] sm:$0xff] %v134
    // Predicated region
    $region22: #{classification_head.1} parent=1 // pred_check
      _
    $region23: #{classification_head.1} parent=1 // pred_check_branch
      %140 = sbr.rel (0) target = $region25
    $region24: #{classification_head.1} parent=1 // pred_region
      _
    $region25: #{classification_head.1} parent=1 // pred_fallthru
      _
    // Predicated region
    $region26: #{classification_head.1} parent=1 // pred_check
      _
    $region27: #{classification_head.1} parent=1 // pred_check_branch
      %142 = sbr.rel (0) target = $region29
    $region28: #{classification_head.1} parent=1 // pred_region
      _
    $region29: #{classification_head.1} parent=1 // pred_fallthru
      _
    %143 = vsyncpa [#allocation3], 1
    %144 = vsyncpa [#allocation5], 1

</llo_original>
